<compile_context>
chip_gen: v5e
topology: v5e:2x2
jax: 0.10.0
libtpu: 0.0.40
codegen_flags: <defaults>
</compile_context>

<pallas_src>
import functools

import jax
import jax.numpy as jnp
from jax import lax
from jax.experimental import pallas as pl
from jax.experimental.pallas import tpu as pltpu


# ----------------------------------------------------------------------------
# Pallas kernel: the _apply() hot path (loss reductions), lane-dense layout.
#   conf_ref  : (B, C, P) f32   -- classes on sublanes, priors on lanes
#   ploc_ref  : (B, 4, P) f32
#   labels_ref: (B, P)    i32
#   gtloc_ref : (B, 4, P) f32
#   out_ref   : (1, 128)  f32   -- [reg/npos, cls/npos, total, 0, ...]
# ----------------------------------------------------------------------------
def _multibox_loss_kernel(conf_ref, ploc_ref, labels_ref, gtloc_ref, out_ref,
                          *, neg_pos_ratio):
    conf = conf_ref[...].astype(jnp.float32)       # (B, C, P)
    ploc = ploc_ref[...].astype(jnp.float32)       # (B, 4, P)
    gtloc = gtloc_ref[...].astype(jnp.float32)     # (B, 4, P)
    labels = labels_ref[...]                       # (B, P) int32

    B, C, P = conf.shape

    # log-softmax over classes (sublane axis); background negative log-prob.
    m = jnp.max(conf, axis=1, keepdims=True)                              # (B,1,P)
    lse = m + jnp.log(jnp.sum(jnp.exp(conf - m), axis=1, keepdims=True))  # (B,1,P)
    lse2d = lse[:, 0, :]                                                  # (B,P)
    bg_nll = lse2d - conf[:, 0, :]      # == -log_softmax(conf)[..., 0]

    # hard negative mining (rank-based equivalent of torch's double-sort).
    pos_mask = labels > 0                                        # (B,P)
    num_pos_b = jnp.sum(pos_mask, axis=1, keepdims=True)         # (B,1) i32
    num_neg_b = num_pos_b * jnp.int32(neg_pos_ratio)

    NEG_INF = jnp.float32(-1e30)
    loss_m = jnp.where(pos_mask, NEG_INF, bg_nll)                # positives excluded

    # 2-D tie-break triangle (hoisted out of the batched pairwise compare).
    ii = lax.broadcasted_iota(jnp.int32, (P, P), 0)              # row index i
    jj = lax.broadcasted_iota(jnp.int32, (P, P), 1)              # col index j
    tri = jj < ii                                                # (P,P)

    li = loss_m[:, :, None]                                      # (B,P,1)
    lj = loss_m[:, None, :]                                      # (B,1,P)
    before = (lj > li) | ((lj == li) & tri[None, :, :])          # stable desc. rank
    rank = jnp.sum(before, axis=2)                               # (B,P) i32
    neg_mask = rank < num_neg_b
    # NOTE: when num_neg exceeds true negatives, some positives (loss=-1e30)
    # acquire small ranks; the union with pos_mask makes that harmless and
    # matches the PyTorch sort-based behavior.
    mask = pos_mask | neg_mask

    # classification loss: sum of cross-entropy over selected priors.
    cls_iota = lax.broadcasted_iota(jnp.int32, (B, C, P), 1)
    onehot = cls_iota == labels[:, None, :]
    conf_at_label = jnp.sum(jnp.where(onehot, conf, 0.0), axis=1)   # (B,P)
    ce = lse2d - conf_at_label
    cls_sum = jnp.sum(jnp.where(mask, ce, 0.0))

    # smooth L1 over positive priors (beta = 1.0, reduction='sum').
    d = ploc - gtloc
    ad = jnp.abs(d)
    sl1 = jnp.where(ad < 1.0, 0.5 * d * d, ad - 0.5)                # (B,4,P)
    reg_sum = jnp.sum(jnp.where(pos_mask[:, None, :], sl1, 0.0))

    npos = jnp.sum(pos_mask.astype(jnp.float32))                    # scalar f32

    # epilogue: normalize by num_pos (guarded) and store one lane-dense row.
    lane = lax.broadcasted_iota(jnp.int32, (1, 128), 1)
    row_raw = jnp.where(lane == 0, reg_sum,
              jnp.where(lane == 1, cls_sum,
              jnp.where(lane == 2, reg_sum + cls_sum, 0.0)))        # (1,128)
    npos_row = jnp.full((1, 128), npos, dtype=jnp.float32)
    inv_row = pl.reciprocal(jnp.maximum(npos_row, 1.0), approx=True)
    scale_row = jnp.where(npos_row > 0.0, inv_row, 1.0)
    out_ref[...] = row_raw * scale_row


def multibox_loss_apply(confidence, predicted_locations, labels, gt_locations,
                        neg_pos_ratio):
    B, P, C = confidence.shape

    # Lane-dense layouts: priors axis (P=128) goes to the lane dimension.
    conf_t = jnp.transpose(confidence, (0, 2, 1))            # (B, C, P)
    ploc_t = jnp.transpose(predicted_locations, (0, 2, 1))   # (B, 4, P)
    gtloc_t = jnp.transpose(gt_locations, (0, 2, 1))         # (B, 4, P)
    labels_i = labels.astype(jnp.int32)                      # no-op if already i32

    kernel = functools.partial(_multibox_loss_kernel,
                               neg_pos_ratio=neg_pos_ratio)
    vmem = pl.BlockSpec(memory_space=pltpu.MemorySpace.VMEM)

    cost = pl.CostEstimate(
        flops=4 * B * P * P + 24 * B * P * C + 12 * B * P * 4,
        transcendentals=B * P * C + B * P + 128,
        bytes_accessed=4 * (B * P * C + 2 * B * P * 4 + B * P + 128),
    )

    out = pl.pallas_call(
        kernel,
        out_shape=jax.ShapeDtypeStruct((1, 128), jnp.float32),
        in_specs=[vmem, vmem, vmem, vmem],
        out_specs=vmem,
        cost_estimate=cost,
    )(conf_t, ploc_t, labels_i, gtloc_t)

    reg = out[0, 0]
    cls = out[0, 1]
    total = out[0, 2]
    return {"reg": reg, "cls": cls, "total": total}


# ----------------------------------------------------------------------------
# Plain-JAX glue: MatchPrior (IoU assignment + box encoding) — preprocessing.
# (This was under torch.no_grad in the original pipeline.)
# ----------------------------------------------------------------------------
def _area_of(lt, rb):
    hw = jnp.clip(rb - lt, 0.0)
    return hw[..., 0] * hw[..., 1]


def _iou_of(b0, b1, eps=1e-5):
    lt = jnp.maximum(b0[..., :2], b1[..., :2])
    rb = jnp.minimum(b0[..., 2:], b1[..., 2:])
    overlap = _area_of(lt, rb)
    a0 = _area_of(b0[..., :2], b0[..., 2:])
    a1 = _area_of(b1[..., :2], b1[..., 2:])
    return overlap / (a0 + a1 - overlap + eps)


def _center_to_corner(b):
    return jnp.concatenate([b[..., :2] - b[..., 2:] / 2,
                            b[..., :2] + b[..., 2:] / 2], axis=-1)


def _corner_to_center(b):
    return jnp.concatenate([(b[..., :2] + b[..., 2:]) / 2,
                            b[..., 2:] - b[..., :2]], axis=-1)


def _assign_priors(gt_boxes, gt_labels, corner_priors, iou_threshold):
    # gt_boxes: (T,4) corner-form, gt_labels: (T,) int32
    T = gt_boxes.shape[0]
    ious = _iou_of(gt_boxes[None, :, :], corner_priors[:, None, :])  # (P, T)
    best_t_per_p = ious.max(axis=1)
    best_t_per_p_idx = ious.argmax(axis=1)
    best_p_per_t_idx = ious.argmax(axis=0)                            # (T,)
    best_t_per_p_idx = best_t_per_p_idx.at[best_p_per_t_idx].set(jnp.arange(T))
    best_t_per_p = best_t_per_p.at[best_p_per_t_idx].set(2.0)
    labels = gt_labels[best_t_per_p_idx]
    labels = jnp.where(best_t_per_p < iou_threshold, 0, labels)
    boxes = gt_boxes[best_t_per_p_idx]
    return boxes, labels


def _convert_boxes_to_locations(center_boxes, center_priors, cvar, svar):
    return jnp.concatenate([
        (center_boxes[..., :2] - center_priors[..., :2])
        / center_priors[..., 2:] / cvar,
        jnp.log(center_boxes[..., 2:] / center_priors[..., 2:]) / svar,
    ], axis=-1)


class MatchPrior:
    def __init__(self, center_form_priors, center_variance, size_variance,
                 iou_threshold=0.5):
        self.center_form_priors = center_form_priors
        self.corner_form_priors = _center_to_corner(center_form_priors)
        self.center_variance = center_variance
        self.size_variance = size_variance
        self.iou_threshold = iou_threshold

    def __call__(self, gt_boxes, gt_labels):
        # batched over the leading batch dim.
        boxes, labels = jax.vmap(
            lambda b, l: _assign_priors(b, l, self.corner_form_priors,
                                        self.iou_threshold))(gt_boxes, gt_labels)
        boxes = _corner_to_center(boxes)
        locations = _convert_boxes_to_locations(
            boxes, self.center_form_priors, self.center_variance,
            self.size_variance)
        return locations, labels.astype(jnp.int32)


class MultiboxLoss:
    def __init__(self, priors, iou_threshold, neg_pos_ratio,
                 center_variance, size_variance):
        self.iou_threshold = iou_threshold
        self.neg_pos_ratio = neg_pos_ratio
        self.center_variance = center_variance
        self.size_variance = size_variance
        # NOTE: the original PyTorch module hardcoded iou_threshold=0.5 here;
        # we pass the constructor value through (identical for the demo).
        self.match_prior = MatchPrior(priors, center_variance, size_variance,
                                      iou_threshold=iou_threshold)
        self.priors = priors
        # One jit over MatchPrior glue + the pallas_call + output unpack:
        # per-op dispatch dominated wall clock for this microsecond kernel.
        self._forward_jit = jax.jit(self._forward_impl)

    def _forward_impl(self, confidence, predicted_locations, gt_boxes,
                      gt_labels):
        locations, labels = self.match_prior(gt_boxes, gt_labels)
        return multibox_loss_apply(confidence, predicted_locations, labels,
                                   locations, self.neg_pos_ratio)

    def forward(self, x, y):
        confidence, predicted_locations = x
        gt_boxes, gt_labels = y
        return self._forward_jit(confidence, predicted_locations, gt_boxes,
                                 gt_labels)


# ----------------------------------------------------------------------------
# Demo / smoke test.
# ----------------------------------------------------------------------------
def _make_priors():
    # 8x8 feature-map grid x 2 box scales = 128 center-form priors.
    fm = 8
    step = 1.0 / fm
    c = (jnp.arange(fm, dtype=jnp.float32) + 0.5) * step
    cx, cy = jnp.meshgrid(c, c, indexing="xy")
    cx = cx.reshape(-1)
    cy = cy.reshape(-1)
    p1 = jnp.stack([cx, cy, jnp.full_like(cx, 0.2), jnp.full_like(cx, 0.2)], -1)
    p2 = jnp.stack([cx, cy, jnp.full_like(cx, 0.35), jnp.full_like(cx, 0.35)], -1)
    return jnp.concatenate([p1, p2], axis=0)          # (128, 4)


if __name__ == "__main__":
    B, P, C, T = 2, 128, 8, 4

    priors = _make_priors()                            # (P, 4) center-form
    loss_mod = MultiboxLoss(priors, iou_threshold=0.5, neg_pos_ratio=3,
                            center_variance=0.1, size_variance=0.2)

    key = jax.random.PRNGKey(0)
    k1, k2, k3, k4, k5 = jax.random.split(key, 5)

    confidence = jax.random.normal(k1, (B, P, C), dtype=jnp.float32)
    predicted_locations = jax.random.normal(k2, (B, P, 4), dtype=jnp.float32)

    # ground-truth boxes in corner form, guaranteed inside [0,1] with w,h > 0.
    centers = jax.random.uniform(k3, (B, T, 2), minval=0.25, maxval=0.75)
    sizes = jax.random.uniform(k4, (B, T, 2), minval=0.15, maxval=0.4)
    gt_boxes = jnp.concatenate([centers - sizes / 2, centers + sizes / 2], -1)
    gt_labels = jax.random.randint(k5, (B, T), minval=1, maxval=C,
                                   dtype=jnp.int32)

    result = loss_mod.forward((confidence, predicted_locations),
                              (gt_boxes, gt_labels))
    jax.block_until_ready(result["total"])

    assert jnp.isfinite(result["total"]), "non-finite loss"
    print("KERNEL_OK")
</pallas_src>

<mosaic_0001>
module attributes {stable_mosaic.version = 11 : i64} {
  func.func @_multibox_loss_kernel(%arg0: memref<2x8x128xf32, #tpu.memory_space<vmem>>, %arg1: memref<2x4x128xf32, #tpu.memory_space<vmem>>, %arg2: memref<2x128xi32, #tpu.memory_space<vmem>>, %arg3: memref<2x4x128xf32, #tpu.memory_space<vmem>>, %arg4: memref<1x128xf32, #tpu.memory_space<vmem>>) attributes {dimension_semantics = [], scalar_prefetch = 0 : i64, scratch_operands = 0 : i64, tpu.core_type = #tpu.core_type<tc>} {
    %c0 = arith.constant 0 : index
    %c0_0 = arith.constant 0 : index
    %c0_1 = arith.constant 0 : index
    %0 = vector.load %arg0[%c0, %c0_0, %c0_1] : memref<2x8x128xf32, #tpu.memory_space<vmem>>, vector<2x8x128xf32>
    %c0_2 = arith.constant 0 : index
    %c0_3 = arith.constant 0 : index
    %c0_4 = arith.constant 0 : index
    %1 = vector.load %arg1[%c0_2, %c0_3, %c0_4] : memref<2x4x128xf32, #tpu.memory_space<vmem>>, vector<2x4x128xf32>
    %c0_5 = arith.constant 0 : index
    %c0_6 = arith.constant 0 : index
    %c0_7 = arith.constant 0 : index
    %2 = vector.load %arg3[%c0_5, %c0_6, %c0_7] : memref<2x4x128xf32, #tpu.memory_space<vmem>>, vector<2x4x128xf32>
    %c0_8 = arith.constant 0 : index
    %c0_9 = arith.constant 0 : index
    %3 = vector.load %arg2[%c0_8, %c0_9] : memref<2x128xi32, #tpu.memory_space<vmem>>, vector<2x128xi32>
    %cst = arith.constant dense<0xFF800000> : vector<2x128xf32>
    %4 = vector.multi_reduction <maximumf>, %0, %cst [1] : vector<2x8x128xf32> to vector<2x128xf32>
    %5 = vector.shape_cast %4 : vector<2x128xf32> to vector<2x1x128xf32>
    %6 = vector.broadcast %5 : vector<2x1x128xf32> to vector<2x8x128xf32>
    %7 = arith.subf %0, %6 : vector<2x8x128xf32>
    %8 = math.exp %7 : vector<2x8x128xf32>
    %cst_10 = arith.constant dense<0.000000e+00> : vector<2x128xf32>
    %9 = vector.multi_reduction <add>, %8, %cst_10 [1] : vector<2x8x128xf32> to vector<2x128xf32>
    %10 = vector.shape_cast %9 : vector<2x128xf32> to vector<2x1x128xf32>
    %11 = math.log %10 : vector<2x1x128xf32>
    %12 = arith.addf %5, %11 : vector<2x1x128xf32>
    %13 = vector.shape_cast %12 : vector<2x1x128xf32> to vector<2x128xf32>
    %14 = vector.extract_strided_slice %0 {offsets = [0, 0, 0], sizes = [2, 1, 128], strides = [1, 1, 1]} : vector<2x8x128xf32> to vector<2x1x128xf32>
    %15 = vector.shape_cast %14 : vector<2x1x128xf32> to vector<2x128xf32>
    %16 = arith.subf %13, %15 : vector<2x128xf32>
    %c0_i32 = arith.constant 0 : i32
    %17 = vector.broadcast %c0_i32 : i32 to vector<2x128xi32>
    %18 = arith.cmpi sgt, %3, %17 : vector<2x128xi32>
    %19 = arith.extui %18 : vector<2x128xi1> to vector<2x128xi32>
    %cst_11 = arith.constant dense<0> : vector<2xi32>
    %20 = vector.multi_reduction <add>, %19, %cst_11 [1] : vector<2x128xi32> to vector<2xi32>
    %21 = vector.shape_cast %20 : vector<2xi32> to vector<2x1xi32>
    %c3_i32 = arith.constant 3 : i32
    %22 = vector.broadcast %c3_i32 : i32 to vector<2x1xi32>
    %23 = arith.muli %21, %22 : vector<2x1xi32>
    %cst_12 = arith.constant -1.000000e+30 : f32
    %24 = vector.broadcast %cst_12 : f32 to vector<2x128xf32>
    %25 = arith.select %18, %24, %16 : vector<2x128xi1>, vector<2x128xf32>
    %26 = tpu.iota {dimensions = array<i32: 0>} : vector<128x128xi32>
    %27 = tpu.iota {dimensions = array<i32: 1>} : vector<128x128xi32>
    %28 = arith.cmpi slt, %27, %26 : vector<128x128xi32>
    %29 = vector.shape_cast %25 : vector<2x128xf32> to vector<2x128x1xf32>
    %30 = vector.shape_cast %25 : vector<2x128xf32> to vector<2x1x128xf32>
    %31 = vector.broadcast %30 : vector<2x1x128xf32> to vector<2x128x128xf32>
    %32 = vector.broadcast %29 : vector<2x128x1xf32> to vector<2x128x128xf32>
    %33 = arith.cmpf ogt, %31, %32 : vector<2x128x128xf32>
    %34 = vector.broadcast %30 : vector<2x1x128xf32> to vector<2x128x128xf32>
    %35 = vector.broadcast %29 : vector<2x128x1xf32> to vector<2x128x128xf32>
    %36 = arith.cmpf oeq, %34, %35 : vector<2x128x128xf32>
    %37 = vector.shape_cast %28 : vector<128x128xi1> to vector<1x128x128xi1>
    %38 = vector.broadcast %37 : vector<1x128x128xi1> to vector<2x128x128xi1>
    %39 = arith.andi %36, %38 : vector<2x128x128xi1>
    %40 = arith.ori %33, %39 : vector<2x128x128xi1>
    %41 = arith.extui %40 : vector<2x128x128xi1> to vector<2x128x128xi32>
    %cst_13 = arith.constant dense<0> : vector<2x128xi32>
    %42 = vector.multi_reduction <add>, %41, %cst_13 [2] : vector<2x128x128xi32> to vector<2x128xi32>
    %43 = vector.broadcast %23 : vector<2x1xi32> to vector<2x128xi32>
    %44 = arith.cmpi slt, %42, %43 : vector<2x128xi32>
    %45 = arith.ori %18, %44 : vector<2x128xi1>
    %46 = tpu.iota {dimensions = array<i32: 1>} : vector<2x8x128xi32>
    %47 = vector.shape_cast %3 : vector<2x128xi32> to vector<2x1x128xi32>
    %48 = vector.broadcast %47 : vector<2x1x128xi32> to vector<2x8x128xi32>
    %49 = arith.cmpi eq, %46, %48 : vector<2x8x128xi32>
    %cst_14 = arith.constant 0.000000e+00 : f32
    %50 = vector.broadcast %cst_14 : f32 to vector<2x8x128xf32>
    %51 = arith.select %49, %0, %50 : vector<2x8x128xi1>, vector<2x8x128xf32>
    %cst_15 = arith.constant dense<0.000000e+00> : vector<2x128xf32>
    %52 = vector.multi_reduction <add>, %51, %cst_15 [1] : vector<2x8x128xf32> to vector<2x128xf32>
    %53 = arith.subf %13, %52 : vector<2x128xf32>
    %cst_16 = arith.constant 0.000000e+00 : f32
    %54 = vector.broadcast %cst_16 : f32 to vector<2x128xf32>
    %55 = arith.select %45, %53, %54 : vector<2x128xi1>, vector<2x128xf32>
    %56 = vector.shape_cast %55 : vector<2x128xf32> to vector<1x2x128xf32>
    %cst_17 = arith.constant dense<0.000000e+00> : vector<1xf32>
    %57 = vector.multi_reduction <add>, %56, %cst_17 [1, 2] : vector<1x2x128xf32> to vector<1xf32>
    %58 = vector.shape_cast %57 : vector<1xf32> to vector<1x1x1xf32>
    %59 = vector.extract %58[0, 0, 0] : f32 from vector<1x1x1xf32>
    %60 = arith.subf %1, %2 : vector<2x4x128xf32>
    %61 = math.absf %60 : vector<2x4x128xf32>
    %cst_18 = arith.constant 1.000000e+00 : f32
    %62 = vector.broadcast %cst_18 : f32 to vector<2x4x128xf32>
    %63 = arith.cmpf olt, %61, %62 : vector<2x4x128xf32>
    %cst_19 = arith.constant 5.000000e-01 : f32
    %64 = vector.broadcast %cst_19 : f32 to vector<2x4x128xf32>
    %65 = arith.mulf %64, %60 : vector<2x4x128xf32>
    %66 = arith.mulf %65, %60 : vector<2x4x128xf32>
    %cst_20 = arith.constant 5.000000e-01 : f32
    %67 = vector.broadcast %cst_20 : f32 to vector<2x4x128xf32>
    %68 = arith.subf %61, %67 : vector<2x4x128xf32>
    %69 = arith.select %63, %66, %68 : vector<2x4x128xi1>, vector<2x4x128xf32>
    %70 = vector.shape_cast %18 : vector<2x128xi1> to vector<2x1x128xi1>
    %cst_21 = arith.constant 0.000000e+00 : f32
    %71 = vector.shape_cast %70 : vector<2x1x128xi1> to vector<2x1x128xi1>
    %72 = vector.broadcast %71 : vector<2x1x128xi1> to vector<2x4x128xi1>
    %73 = vector.broadcast %cst_21 : f32 to vector<2x4x128xf32>
    %74 = arith.select %72, %69, %73 : vector<2x4x128xi1>, vector<2x4x128xf32>
    %75 = vector.shape_cast %74 : vector<2x4x128xf32> to vector<1x2x4x128xf32>
    %cst_22 = arith.constant dense<0.000000e+00> : vector<1xf32>
    %76 = vector.multi_reduction <add>, %75, %cst_22 [1, 2, 3] : vector<1x2x4x128xf32> to vector<1xf32>
    %77 = vector.shape_cast %76 : vector<1xf32> to vector<1x1x1x1xf32>
    %78 = vector.extract %77[0, 0, 0, 0] : f32 from vector<1x1x1x1xf32>
    %79 = arith.extui %18 : vector<2x128xi1> to vector<2x128xi32>
    %80 = arith.sitofp %79 : vector<2x128xi32> to vector<2x128xf32>
    %81 = vector.shape_cast %80 : vector<2x128xf32> to vector<1x2x128xf32>
    %cst_23 = arith.constant dense<0.000000e+00> : vector<1xf32>
    %82 = vector.multi_reduction <add>, %81, %cst_23 [1, 2] : vector<1x2x128xf32> to vector<1xf32>
    %83 = vector.shape_cast %82 : vector<1xf32> to vector<1x1x1xf32>
    %84 = vector.extract %83[0, 0, 0] : f32 from vector<1x1x1xf32>
    %85 = tpu.iota {dimensions = array<i32: 1>} : vector<1x128xi32>
    %c0_i32_24 = arith.constant 0 : i32
    %86 = vector.broadcast %c0_i32_24 : i32 to vector<1x128xi32>
    %87 = arith.cmpi eq, %85, %86 : vector<1x128xi32>
    %c1_i32 = arith.constant 1 : i32
    %88 = vector.broadcast %c1_i32 : i32 to vector<1x128xi32>
    %89 = arith.cmpi eq, %85, %88 : vector<1x128xi32>
    %c2_i32 = arith.constant 2 : i32
    %90 = vector.broadcast %c2_i32 : i32 to vector<1x128xi32>
    %91 = arith.cmpi eq, %85, %90 : vector<1x128xi32>
    %92 = arith.addf %78, %59 : f32
    %cst_25 = arith.constant 0.000000e+00 : f32
    %93 = vector.broadcast %92 : f32 to vector<1x128xf32>
    %94 = vector.broadcast %cst_25 : f32 to vector<1x128xf32>
    %95 = arith.select %91, %93, %94 : vector<1x128xi1>, vector<1x128xf32>
    %96 = vector.broadcast %59 : f32 to vector<1x128xf32>
    %97 = arith.select %89, %96, %95 : vector<1x128xi1>, vector<1x128xf32>
    %98 = vector.broadcast %78 : f32 to vector<1x128xf32>
    %99 = arith.select %87, %98, %97 : vector<1x128xi1>, vector<1x128xf32>
    %100 = vector.broadcast %84 : f32 to vector<1x128xf32>
    %cst_26 = arith.constant 1.000000e+00 : f32
    %101 = vector.broadcast %cst_26 : f32 to vector<1x128xf32>
    %102 = arith.maximumf %100, %101 : vector<1x128xf32>
    %103 = tpu.reciprocal %102 {approx = true} : vector<1x128xf32> -> vector<1x128xf32>
    %cst_27 = arith.constant 0.000000e+00 : f32
    %104 = vector.broadcast %cst_27 : f32 to vector<1x128xf32>
    %105 = arith.cmpf ogt, %100, %104 : vector<1x128xf32>
    %cst_28 = arith.constant 1.000000e+00 : f32
    %106 = vector.broadcast %cst_28 : f32 to vector<1x128xf32>
    %107 = arith.select %105, %103, %106 : vector<1x128xi1>, vector<1x128xf32>
    %108 = arith.mulf %99, %107 : vector<1x128xf32>
    %c0_29 = arith.constant 0 : index
    %c0_30 = arith.constant 0 : index
    %109 = vector.load %arg4[%c0_29, %c0_30] : memref<1x128xf32, #tpu.memory_space<vmem>>, vector<1x128xf32>
    tpu.vector_store %arg4[%c0_29, %c0_30], %108 {strides = array<i32>} : memref<1x128xf32, #tpu.memory_space<vmem>>, vector<1x128xf32>,
    return
  }
}

</mosaic_0001>

<llo_original>
// kernel: _forward_impl.1
$region0: #{_forward_impl.1}
  #allocation0 [shape = 'u32[]', space=smem, size = 0x4, offset = 0x4, fixed_abs, tag = 'smem constant byte address 0x4 - core index']
  #allocation1 [shape = 'u32[72,128]{1,0:T(1,128)}', space=vmem, size = 0x9000, scoped, tag = 'internal scratch']
  %s0 = inlined_call_operand.vmem [shape: f32[2,8,128], index: 0, kind: input, shape index: {}]
  %s1 = inlined_call_operand.vmem [shape: f32[2,4,128], index: 1, kind: input, shape index: {}]
  %s2 = inlined_call_operand.vmem [shape: s32[2,128], index: 2, kind: input, shape index: {}]
  %s3 = inlined_call_operand.vmem [shape: f32[2,4,128], index: 3, kind: input, shape index: {}]
  %s4 = inlined_call_operand.vmem [shape: f32[1,128], index: 4, kind: output, shape index: {}]
  %s5 = sld [smem:[#allocation0]]
  $region26: #{_forward_impl.1} parent=0
    _
  %s7 = ssub.s32 1, %s5
  %s8 = scalar_select 0, %s7, %s5
  // Predicated region
  $region2: #{_forward_impl.1} parent=0 // pred_check
    _
  $region3: #{_forward_impl.1} parent=0 // pred_check_branch
    %10 = sbr.rel (0) target = $region5
  $region4: #{_forward_impl.1} parent=0 // pred_region
    _
  $region5: #{_forward_impl.1} parent=0 // pred_fallthru
    _
  // Predicated region
  $region6: #{_forward_impl.1} parent=0 // pred_check
    _
  $region7: #{_forward_impl.1} parent=0 // pred_check_branch
    %12 = sbr.rel (0) target = $region9
  $region8: #{_forward_impl.1} parent=0 // pred_region
    _
  $region9: #{_forward_impl.1} parent=0 // pred_fallthru
    _
  // Predicated region
  $region10: #{_forward_impl.1} parent=0 // pred_check
    _
  $region11: #{_forward_impl.1} parent=0 // pred_check_branch
    %14 = sbr.rel (0) target = $region13
  $region12: #{_forward_impl.1} parent=0 // pred_region
    _
  $region13: #{_forward_impl.1} parent=0 // pred_fallthru
    _
  // Predicated region
  $region14: #{_forward_impl.1} parent=0 // pred_check
    _
  $region15: #{_forward_impl.1} parent=0 // pred_check_branch
    %16 = sbr.rel (0) target = $region17
  $region16: #{_forward_impl.1} parent=0 // pred_region
    _
  $region17: #{_forward_impl.1} parent=0 // pred_fallthru
    _
  %v17 = vld [vmem:[%s0] sm:$0xff]
  %v18 = vld [vmem:[%s0 + $0x8] sm:$0xff]
  %v19 = vld [vmem:[%s1] sm:$0xf]
  %v20 = vld [vmem:[%s1 + $0x4] sm:$0xf]
  %v21 = vld [vmem:[%s3] sm:$0xf]
  %v22 = vld [vmem:[%s3 + $0x4] sm:$0xf]
  %v23 = vld [vmem:[%s2] sm:$0x3]
  %v24 = vrot.slane %v17, 4
  %v25 = vmax.f32 %v17, %v24
  %v26 = vrot.slane %v25, 2
  %v27 = vmax.f32 %v25, %v26
  %v28 = vrot.slane %v27, 1
  %v29 = vmax.f32 %v27, %v28
  %v30 = vrot.slane %v18, 4
  %v31 = vmax.f32 %v18, %v30
  %v32 = vrot.slane %v31, 2
  %v33 = vmax.f32 %v31, %v32
  %v34 = vrot.slane %v33, 1
  %v35 = vmax.f32 %v33, %v34
  %v36 = vsub.f32 %v17, %v29
  %v37 = vsub.f32 %v18, %v35
  %v38 = vmul.f32 %v36, 1.442695
  %v39 = vpow.pop %v38
  %v40 = vmul.f32 %v37, 1.442695
  %v41 = vpow.pop %v40
  %v42 = vrot.slane %v39, 4
  %v43 = vadd.f32 %v39, %v42
  %v44 = vrot.slane %v43, 2
  %v45 = vadd.f32 %v43, %v44
  %v46 = vrot.slane %v45, 1
  %v47 = vadd.f32 %v45, %v46
  %v48 = vrot.slane %v41, 4
  %v49 = vadd.f32 %v41, %v48
  %v50 = vrot.slane %v49, 2
  %v51 = vadd.f32 %v49, %v50
  %v52 = vrot.slane %v51, 1
  %v53 = vadd.f32 %v51, %v52
  %v54 = vlog2.pop %v47
  %v55 = vmul.f32 %v54, 0.6931472
  %v56 = vlog2.pop %v53
  %v57 = vmul.f32 %v56, 0.6931472
  %v58 = vadd.f32 %v29, %v55
  %v59 = vadd.f32 %v35, %v57
  %v60 = vsub.f32 %v58, %v17
  %v61 = vsub.f32 %v59, %v18
  %vm62 = vcmp.gt.s32.totalorder %v23, 0
  %v63 = vsel %vm62, 1, 0
  %vm64 = vcmask 1041408
  %v65 = vsel %vm64, %v63, 0
  %v66 = vand.u32 %v65, 65535
  %v67 = vshrl.u32 %v65, 16
  %v68 = vcvt.s32.f32 %v66
  %v69 = vcvt.s32.f32 %v67
  %70 = vadd.xlane.f32.xlu0 %v68
  %v71 = vpop.xlane.xlu0 %70
  %72 = vadd.xlane.f32.xlu0 %v69
  %v73 = vpop.xlane.xlu0 %72
  %v74 = vcvt.f32.s32 %v71
  %v75 = vcvt.f32.s32 %v73
  %v76 = vshll.u32 %v75, 16
  %v77 = vadd.s32 %v76, %v74
  %v78 = vmul.u32 %v77, 3
  %v81 = vrot.slane %v61, 7
  %vm82 = vcmask 1041409
  %v83 = vsel %vm82, %v81, %v60
  %v85 = vsel %vm62, -1e+30, %v83
  %v86 = vlaneseq
  %v87 = vshrl.u32 %v86, 7
  %v88 = vadd.s32 %v87, 8
  %v89 = vadd.s32 %v87, 16
  %v90 = vadd.s32 %v87, 24
  %v91 = vadd.s32 %v87, 32
  %v92 = vadd.s32 %v87, 40
  %v93 = vadd.s32 %v87, 48
  %v94 = vadd.s32 %v87, 56
  %v95 = vadd.s32 %v87, 64
  %v96 = vadd.s32 %v87, 72
  %v97 = vadd.s32 %v87, 80
  %v98 = vadd.s32 %v87, 88
  %v99 = vadd.s32 %v87, 96
  %v100 = vadd.s32 %v87, 104
  %v101 = vadd.s32 %v87, 112
  %v102 = vadd.s32 %v87, 120
  %v103 = vlaneseq
  %v104 = vand.u32 %v103, 127
  %vm105 = vcmp.lt.s32.totalorder %v104, %v87
  %vm106 = vcmp.lt.s32.totalorder %v104, %v88
  %vm107 = vcmp.lt.s32.totalorder %v104, %v89
  %vm108 = vcmp.lt.s32.totalorder %v104, %v90
  %vm109 = vcmp.lt.s32.totalorder %v104, %v91
  %vm110 = vcmp.lt.s32.totalorder %v104, %v92
  %vm111 = vcmp.lt.s32.totalorder %v104, %v93
  %vm112 = vcmp.lt.s32.totalorder %v104, %v94
  %vm113 = vcmp.lt.s32.totalorder %v104, %v95
  %vm114 = vcmp.lt.s32.totalorder %v104, %v96
  %vm115 = vcmp.lt.s32.totalorder %v104, %v97
  %vm116 = vcmp.lt.s32.totalorder %v104, %v98
  %vm117 = vcmp.lt.s32.totalorder %v104, %v99
  %vm118 = vcmp.lt.s32.totalorder %v104, %v100
  %vm119 = vcmp.lt.s32.totalorder %v104, %v101
  %vm120 = vcmp.lt.s32.totalorder %v104, %v102
  %v121 = vperm.slane %v85, 0
  %v122 = vlaneseq
  %v123 = vshrl.u32 %v122, 7
  %125 = vset.pattern.permute.xlu0 %v123
  %126 = vperm.xlu0 %125, %v121
  %v127 = vpop.permute.xlu0 %126
  %v128 = vlaneseq
  %v129 = vshrl.u32 %v128, 7
  %v130 = vadd.s32 %v129, 8
  %131 = vset.pattern.permute.xlu0 %v130
  %132 = vperm.xlu0 %131, %v121
  %v133 = vpop.permute.xlu0 %132
  %v134 = vlaneseq
  %v135 = vshrl.u32 %v134, 7
  %v136 = vadd.s32 %v135, 16
  %137 = vset.pattern.permute.xlu0 %v136
  %138 = vperm.xlu0 %137, %v121
  %v139 = vpop.permute.xlu0 %138
  %v140 = vlaneseq
  %v141 = vshrl.u32 %v140, 7
  %v142 = vadd.s32 %v141, 24
  %143 = vset.pattern.permute.xlu0 %v142
  %144 = vperm.xlu0 %143, %v121
  %v145 = vpop.permute.xlu0 %144
  %v146 = vlaneseq
  %v147 = vshrl.u32 %v146, 7
  %v148 = vadd.s32 %v147, 32
  %149 = vset.pattern.permute.xlu0 %v148
  %150 = vperm.xlu0 %149, %v121
  %v151 = vpop.permute.xlu0 %150
  %v152 = vlaneseq
  %v153 = vshrl.u32 %v152, 7
  %v154 = vadd.s32 %v153, 40
  %155 = vset.pattern.permute.xlu0 %v154
  %156 = vperm.xlu0 %155, %v121
  %v157 = vpop.permute.xlu0 %156
  %v158 = vlaneseq
  %v159 = vshrl.u32 %v158, 7
  %v160 = vadd.s32 %v159, 48
  %161 = vset.pattern.permute.xlu0 %v160
  %162 = vperm.xlu0 %161, %v121
  %v163 = vpop.permute.xlu0 %162
  %v164 = vlaneseq
  %v165 = vshrl.u32 %v164, 7
  %v166 = vadd.s32 %v165, 56
  %167 = vset.pattern.permute.xlu0 %v166
  %168 = vperm.xlu0 %167, %v121
  %v169 = vpop.permute.xlu0 %168
  %v170 = vlaneseq
  %v171 = vshrl.u32 %v170, 7
  %v172 = vadd.s32 %v171, 64
  %173 = vset.pattern.permute.xlu0 %v172
  %174 = vperm.xlu0 %173, %v121
  %v175 = vpop.permute.xlu0 %174
  %v176 = vlaneseq
  %v177 = vshrl.u32 %v176, 7
  %v178 = vadd.s32 %v177, 72
  %179 = vset.pattern.permute.xlu0 %v178
  %180 = vperm.xlu0 %179, %v121
  %v181 = vpop.permute.xlu0 %180
  %v182 = vlaneseq
  %v183 = vshrl.u32 %v182, 7
  %v184 = vadd.s32 %v183, 80
  %185 = vset.pattern.permute.xlu0 %v184
  %186 = vperm.xlu0 %185, %v121
  %v187 = vpop.permute.xlu0 %186
  %v188 = vlaneseq
  %v189 = vshrl.u32 %v188, 7
  %v190 = vadd.s32 %v189, 88
  %191 = vset.pattern.permute.xlu0 %v190
  %192 = vperm.xlu0 %191, %v121
  %v193 = vpop.permute.xlu0 %192
  %v194 = vlaneseq
  %v195 = vshrl.u32 %v194, 7
  %v196 = vadd.s32 %v195, 96
  %197 = vset.pattern.permute.xlu0 %v196
  %198 = vperm.xlu0 %197, %v121
  %v199 = vpop.permute.xlu0 %198
  %v200 = vlaneseq
  %v201 = vshrl.u32 %v200, 7
  %v202 = vadd.s32 %v201, 104
  %203 = vset.pattern.permute.xlu0 %v202
  %204 = vperm.xlu0 %203, %v121
  %v205 = vpop.permute.xlu0 %204
  %v206 = vlaneseq
  %v207 = vshrl.u32 %v206, 7
  %v208 = vadd.s32 %v207, 112
  %209 = vset.pattern.permute.xlu0 %v208
  %210 = vperm.xlu0 %209, %v121
  %v211 = vpop.permute.xlu0 %210
  %v212 = vlaneseq
  %v213 = vshrl.u32 %v212, 7
  %v214 = vadd.s32 %v213, 120
  %215 = vset.pattern.permute.xlu0 %v214
  %216 = vperm.xlu0 %215, %v121
  %v217 = vpop.permute.xlu0 %216
  %v218 = vperm.slane %v85, 1
  %v219 = vlaneseq
  %v220 = vshrl.u32 %v219, 7
  %222 = vset.pattern.permute.xlu0 %v220
  %223 = vperm.xlu0 %222, %v218
  %v224 = vpop.permute.xlu0 %223
  %v225 = vlaneseq
  %v226 = vshrl.u32 %v225, 7
  %v227 = vadd.s32 %v226, 8
  %228 = vset.pattern.permute.xlu0 %v227
  %229 = vperm.xlu0 %228, %v218
  %v230 = vpop.permute.xlu0 %229
  %v231 = vlaneseq
  %v232 = vshrl.u32 %v231, 7
  %v233 = vadd.s32 %v232, 16
  %234 = vset.pattern.permute.xlu0 %v233
  %235 = vperm.xlu0 %234, %v218
  %v236 = vpop.permute.xlu0 %235
  %v237 = vlaneseq
  %v238 = vshrl.u32 %v237, 7
  %v239 = vadd.s32 %v238, 24
  %240 = vset.pattern.permute.xlu0 %v239
  %241 = vperm.xlu0 %240, %v218
  %v242 = vpop.permute.xlu0 %241
  %v243 = vlaneseq
  %v244 = vshrl.u32 %v243, 7
  %v245 = vadd.s32 %v244, 32
  %246 = vset.pattern.permute.xlu0 %v245
  %247 = vperm.xlu0 %246, %v218
  %v248 = vpop.permute.xlu0 %247
  %v249 = vlaneseq
  %v250 = vshrl.u32 %v249, 7
  %v251 = vadd.s32 %v250, 40
  %252 = vset.pattern.permute.xlu0 %v251
  %253 = vperm.xlu0 %252, %v218
  %v254 = vpop.permute.xlu0 %253
  %v255 = vlaneseq
  %v256 = vshrl.u32 %v255, 7
  %v257 = vadd.s32 %v256, 48
  %258 = vset.pattern.permute.xlu0 %v257
  %259 = vperm.xlu0 %258, %v218
  %v260 = vpop.permute.xlu0 %259
  %v261 = vlaneseq
  %v262 = vshrl.u32 %v261, 7
  %v263 = vadd.s32 %v262, 56
  %264 = vset.pattern.permute.xlu0 %v263
  %265 = vperm.xlu0 %264, %v218
  %v266 = vpop.permute.xlu0 %265
  %v267 = vlaneseq
  %v268 = vshrl.u32 %v267, 7
  %v269 = vadd.s32 %v268, 64
  %270 = vset.pattern.permute.xlu0 %v269
  %271 = vperm.xlu0 %270, %v218
  %v272 = vpop.permute.xlu0 %271
  %v273 = vlaneseq
  %v274 = vshrl.u32 %v273, 7
  %v275 = vadd.s32 %v274, 72
  %276 = vset.pattern.permute.xlu0 %v275
  %277 = vperm.xlu0 %276, %v218
  %v278 = vpop.permute.xlu0 %277
  %v279 = vlaneseq
  %v280 = vshrl.u32 %v279, 7
  %v281 = vadd.s32 %v280, 80
  %282 = vset.pattern.permute.xlu0 %v281
  %283 = vperm.xlu0 %282, %v218
  %v284 = vpop.permute.xlu0 %283
  %v285 = vlaneseq
  %v286 = vshrl.u32 %v285, 7
  %v287 = vadd.s32 %v286, 88
  %288 = vset.pattern.permute.xlu0 %v287
  %289 = vperm.xlu0 %288, %v218
  %v290 = vpop.permute.xlu0 %289
  %v291 = vlaneseq
  %v292 = vshrl.u32 %v291, 7
  %v293 = vadd.s32 %v292, 96
  %294 = vset.pattern.permute.xlu0 %v293
  %295 = vperm.xlu0 %294, %v218
  %v296 = vpop.permute.xlu0 %295
  %v297 = vlaneseq
  %v298 = vshrl.u32 %v297, 7
  %v299 = vadd.s32 %v298, 104
  %300 = vset.pattern.permute.xlu0 %v299
  %301 = vperm.xlu0 %300, %v218
  %v302 = vpop.permute.xlu0 %301
  %v303 = vlaneseq
  %v304 = vshrl.u32 %v303, 7
  %v305 = vadd.s32 %v304, 112
  %306 = vset.pattern.permute.xlu0 %v305
  %307 = vperm.xlu0 %306, %v218
  %v308 = vpop.permute.xlu0 %307
  %v309 = vlaneseq
  %v310 = vshrl.u32 %v309, 7
  %v311 = vadd.s32 %v310, 120
  %312 = vset.pattern.permute.xlu0 %v311
  %313 = vperm.xlu0 %312, %v218
  %v314 = vpop.permute.xlu0 %313
  %v316 = vrot.slane %v85, 1
  %v317 = vperm.slane %v85, 0
  %v318 = vperm.slane %v316, 0
  %vm321 = vcmp.gt.f32.partialorder %v317, %v127
  %vm322 = vcmp.gt.f32.partialorder %v317, %v133
  %vm323 = vcmp.gt.f32.partialorder %v317, %v139
  %vm324 = vcmp.gt.f32.partialorder %v317, %v145
  %vm325 = vcmp.gt.f32.partialorder %v317, %v151
  %vm326 = vcmp.gt.f32.partialorder %v317, %v157
  %vm327 = vcmp.gt.f32.partialorder %v317, %v163
  %vm328 = vcmp.gt.f32.partialorder %v317, %v169
  %vm329 = vcmp.gt.f32.partialorder %v317, %v175
  %vm330 = vcmp.gt.f32.partialorder %v317, %v181
  %vm331 = vcmp.gt.f32.partialorder %v317, %v187
  %vm332 = vcmp.gt.f32.partialorder %v317, %v193
  %vm333 = vcmp.gt.f32.partialorder %v317, %v199
  %vm334 = vcmp.gt.f32.partialorder %v317, %v205
  %vm335 = vcmp.gt.f32.partialorder %v317, %v211
  %vm336 = vcmp.gt.f32.partialorder %v317, %v217
  %vm337 = vcmp.gt.f32.partialorder %v318, %v224
  %vm338 = vcmp.gt.f32.partialorder %v318, %v230
  %vm339 = vcmp.gt.f32.partialorder %v318, %v236
  %vm340 = vcmp.gt.f32.partialorder %v318, %v242
  %vm341 = vcmp.gt.f32.partialorder %v318, %v248
  %vm342 = vcmp.gt.f32.partialorder %v318, %v254
  %vm343 = vcmp.gt.f32.partialorder %v318, %v260
  %vm344 = vcmp.gt.f32.partialorder %v318, %v266
  %vm345 = vcmp.gt.f32.partialorder %v318, %v272
  %vm346 = vcmp.gt.f32.partialorder %v318, %v278
  %vm347 = vcmp.gt.f32.partialorder %v318, %v284
  %vm348 = vcmp.gt.f32.partialorder %v318, %v290
  %vm349 = vcmp.gt.f32.partialorder %v318, %v296
  %vm350 = vcmp.gt.f32.partialorder %v318, %v302
  %vm351 = vcmp.gt.f32.partialorder %v318, %v308
  %vm352 = vcmp.gt.f32.partialorder %v318, %v314
  %vm353 = vcmp.eq.f32.partialorder %v317, %v127
  %vm354 = vcmp.eq.f32.partialorder %v317, %v133
  %vm355 = vcmp.eq.f32.partialorder %v317, %v139
  %vm356 = vcmp.eq.f32.partialorder %v317, %v145
  %vm357 = vcmp.eq.f32.partialorder %v317, %v151
  %vm358 = vcmp.eq.f32.partialorder %v317, %v157
  %vm359 = vcmp.eq.f32.partialorder %v317, %v163
  %vm360 = vcmp.eq.f32.partialorder %v317, %v169
  %vm361 = vcmp.eq.f32.partialorder %v317, %v175
  %vm362 = vcmp.eq.f32.partialorder %v317, %v181
  %vm363 = vcmp.eq.f32.partialorder %v317, %v187
  %vm364 = vcmp.eq.f32.partialorder %v317, %v193
  %vm365 = vcmp.eq.f32.partialorder %v317, %v199
  %vm366 = vcmp.eq.f32.partialorder %v317, %v205
  %vm367 = vcmp.eq.f32.partialorder %v317, %v211
  %vm368 = vcmp.eq.f32.partialorder %v317, %v217
  %vm369 = vcmp.eq.f32.partialorder %v318, %v224
  %vm370 = vcmp.eq.f32.partialorder %v318, %v230
  %vm371 = vcmp.eq.f32.partialorder %v318, %v236
  %vm372 = vcmp.eq.f32.partialorder %v318, %v242
  %vm373 = vcmp.eq.f32.partialorder %v318, %v248
  %vm374 = vcmp.eq.f32.partialorder %v318, %v254
  %vm375 = vcmp.eq.f32.partialorder %v318, %v260
  %vm376 = vcmp.eq.f32.partialorder %v318, %v266
  %vm377 = vcmp.eq.f32.partialorder %v318, %v272
  %vm378 = vcmp.eq.f32.partialorder %v318, %v278
  %vm379 = vcmp.eq.f32.partialorder %v318, %v284
  %vm380 = vcmp.eq.f32.partialorder %v318, %v290
  %vm381 = vcmp.eq.f32.partialorder %v318, %v296
  %vm382 = vcmp.eq.f32.partialorder %v318, %v302
  %vm383 = vcmp.eq.f32.partialorder %v318, %v308
  %vm384 = vcmp.eq.f32.partialorder %v318, %v314
  %v385 = vsel %vm105, 1, 0
  %v386 = vsel %vm106, 1, 0
  %v387 = vsel %vm107, 1, 0
  %v388 = vsel %vm108, 1, 0
  %v389 = vsel %vm109, 1, 0
  %v390 = vsel %vm110, 1, 0
  %v391 = vsel %vm111, 1, 0
  %v392 = vsel %vm112, 1, 0
  %v393 = vsel %vm113, 1, 0
  %v394 = vsel %vm114, 1, 0
  %v395 = vsel %vm115, 1, 0
  %v396 = vsel %vm116, 1, 0
  %v397 = vsel %vm117, 1, 0
  %v398 = vsel %vm118, 1, 0
  %v399 = vsel %vm119, 1, 0
  %v400 = vsel %vm120, 1, 0
  %vm401 = vcmp.eq.s32.totalorder %v385, 1
  %vm402 = vcmp.eq.s32.totalorder %v386, 1
  %vm403 = vcmp.eq.s32.totalorder %v387, 1
  %vm404 = vcmp.eq.s32.totalorder %v388, 1
  %vm405 = vcmp.eq.s32.totalorder %v389, 1
  %vm406 = vcmp.eq.s32.totalorder %v390, 1
  %vm407 = vcmp.eq.s32.totalorder %v391, 1
  %vm408 = vcmp.eq.s32.totalorder %v392, 1
  %vm409 = vcmp.eq.s32.totalorder %v393, 1
  %vm410 = vcmp.eq.s32.totalorder %v394, 1
  %vm411 = vcmp.eq.s32.totalorder %v395, 1
  %vm412 = vcmp.eq.s32.totalorder %v396, 1
  %vm413 = vcmp.eq.s32.totalorder %v397, 1
  %vm414 = vcmp.eq.s32.totalorder %v398, 1
  %vm415 = vcmp.eq.s32.totalorder %v399, 1
  %vm416 = vcmp.eq.s32.totalorder %v400, 1
  %vm417 = vmand %vm353, %vm401
  %vm418 = vmand %vm354, %vm402
  %vm419 = vmand %vm355, %vm403
  %vm420 = vmand %vm356, %vm404
  %vm421 = vmand %vm357, %vm405
  %vm422 = vmand %vm358, %vm406
  %vm423 = vmand %vm359, %vm407
  %vm424 = vmand %vm360, %vm408
  %vm425 = vmand %vm361, %vm409
  %vm426 = vmand %vm362, %vm410
  %vm427 = vmand %vm363, %vm411
  %vm428 = vmand %vm364, %vm412
  %vm429 = vmand %vm365, %vm413
  %vm430 = vmand %vm366, %vm414
  %vm431 = vmand %vm367, %vm415
  %vm432 = vmand %vm368, %vm416
  %vm433 = vmand %vm369, %vm401
  %vm434 = vmand %vm370, %vm402
  %vm435 = vmand %vm371, %vm403
  %vm436 = vmand %vm372, %vm404
  %vm437 = vmand %vm373, %vm405
  %vm438 = vmand %vm374, %vm406
  %vm439 = vmand %vm375, %vm407
  %vm440 = vmand %vm376, %vm408
  %vm441 = vmand %vm377, %vm409
  %vm442 = vmand %vm378, %vm410
  %vm443 = vmand %vm379, %vm411
  %vm444 = vmand %vm380, %vm412
  %vm445 = vmand %vm381, %vm413
  %vm446 = vmand %vm382, %vm414
  %vm447 = vmand %vm383, %vm415
  %vm448 = vmand %vm384, %vm416
  %vm449 = vmor %vm321, %vm417
  %vm450 = vmor %vm322, %vm418
  %vm451 = vmor %vm323, %vm419
  %vm452 = vmor %vm324, %vm420
  %vm453 = vmor %vm325, %vm421
  %vm454 = vmor %vm326, %vm422
  %vm455 = vmor %vm327, %vm423
  %vm456 = vmor %vm328, %vm424
  %vm457 = vmor %vm329, %vm425
  %vm458 = vmor %vm330, %vm426
  %vm459 = vmor %vm331, %vm427
  %vm460 = vmor %vm332, %vm428
  %vm461 = vmor %vm333, %vm429
  %vm462 = vmor %vm334, %vm430
  %vm463 = vmor %vm335, %vm431
  %vm464 = vmor %vm336, %vm432
  %vm465 = vmor %vm337, %vm433
  %vm466 = vmor %vm338, %vm434
  %vm467 = vmor %vm339, %vm435
  %vm468 = vmor %vm340, %vm436
  %vm469 = vmor %vm341, %vm437
  %vm470 = vmor %vm342, %vm438
  %vm471 = vmor %vm343, %vm439
  %vm472 = vmor %vm344, %vm440
  %vm473 = vmor %vm345, %vm441
  %vm474 = vmor %vm346, %vm442
  %vm475 = vmor %vm347, %vm443
  %vm476 = vmor %vm348, %vm444
  %vm477 = vmor %vm349, %vm445
  %vm478 = vmor %vm350, %vm446
  %vm479 = vmor %vm351, %vm447
  %vm480 = vmor %vm352, %vm448
  %v481 = vsel %vm449, 1, 0
  %v482 = vsel %vm450, 1, 0
  %v483 = vsel %vm451, 1, 0
  %v484 = vsel %vm452, 1, 0
  %v485 = vsel %vm453, 1, 0
  %v486 = vsel %vm454, 1, 0
  %v487 = vsel %vm455, 1, 0
  %v488 = vsel %vm456, 1, 0
  %v489 = vsel %vm457, 1, 0
  %v490 = vsel %vm458, 1, 0
  %v491 = vsel %vm459, 1, 0
  %v492 = vsel %vm460, 1, 0
  %v493 = vsel %vm461, 1, 0
  %v494 = vsel %vm462, 1, 0
  %v495 = vsel %vm463, 1, 0
  %v496 = vsel %vm464, 1, 0
  %v497 = vsel %vm465, 1, 0
  %v498 = vsel %vm466, 1, 0
  %v499 = vsel %vm467, 1, 0
  %v500 = vsel %vm468, 1, 0
  %v501 = vsel %vm469, 1, 0
  %v502 = vsel %vm470, 1, 0
  %v503 = vsel %vm471, 1, 0
  %v504 = vsel %vm472, 1, 0
  %v505 = vsel %vm473, 1, 0
  %v506 = vsel %vm474, 1, 0
  %v507 = vsel %vm475, 1, 0
  %v508 = vsel %vm476, 1, 0
  %v509 = vsel %vm477, 1, 0
  %v510 = vsel %vm478, 1, 0
  %v511 = vsel %vm479, 1, 0
  %v512 = vsel %vm480, 1, 0
  %v513 = vand.u32 %v481, 65535
  %v514 = vshrl.u32 %v481, 16
  %v515 = vcvt.s32.f32 %v513
  %v516 = vcvt.s32.f32 %v514
  %517 = vadd.xlane.f32.xlu0 %v515
  %v518 = vpop.xlane.xlu0 %517
  %519 = vadd.xlane.f32.xlu0 %v516
  %v520 = vpop.xlane.xlu0 %519
  %v521 = vcvt.f32.s32 %v518
  %v522 = vcvt.f32.s32 %v520
  %v523 = vshll.u32 %v522, 16
  %v524 = vadd.s32 %v523, %v521
  %v525 = vand.u32 %v482, 65535
  %v526 = vshrl.u32 %v482, 16
  %v527 = vcvt.s32.f32 %v525
  %v528 = vcvt.s32.f32 %v526
  %529 = vadd.xlane.f32.xlu0 %v527
  %v530 = vpop.xlane.xlu0 %529
  %531 = vadd.xlane.f32.xlu0 %v528
  %v532 = vpop.xlane.xlu0 %531
  %v533 = vcvt.f32.s32 %v530
  %v534 = vcvt.f32.s32 %v532
  %v535 = vshll.u32 %v534, 16
  %v536 = vadd.s32 %v535, %v533
  %v537 = vand.u32 %v483, 65535
  %v538 = vshrl.u32 %v483, 16
  %v539 = vcvt.s32.f32 %v537
  %v540 = vcvt.s32.f32 %v538
  %541 = vadd.xlane.f32.xlu0 %v539
  %v542 = vpop.xlane.xlu0 %541
  %543 = vadd.xlane.f32.xlu0 %v540
  %v544 = vpop.xlane.xlu0 %543
  %v545 = vcvt.f32.s32 %v542
  %v546 = vcvt.f32.s32 %v544
  %v547 = vshll.u32 %v546, 16
  %v548 = vadd.s32 %v547, %v545
  %v549 = vand.u32 %v484, 65535
  %v550 = vshrl.u32 %v484, 16
  %v551 = vcvt.s32.f32 %v549
  %v552 = vcvt.s32.f32 %v550
  %553 = vadd.xlane.f32.xlu0 %v551
  %v554 = vpop.xlane.xlu0 %553
  %555 = vadd.xlane.f32.xlu0 %v552
  %v556 = vpop.xlane.xlu0 %555
  %v557 = vcvt.f32.s32 %v554
  %v558 = vcvt.f32.s32 %v556
  %v559 = vshll.u32 %v558, 16
  %v560 = vadd.s32 %v559, %v557
  %v561 = vand.u32 %v485, 65535
  %v562 = vshrl.u32 %v485, 16
  %v563 = vcvt.s32.f32 %v561
  %v564 = vcvt.s32.f32 %v562
  %565 = vadd.xlane.f32.xlu0 %v563
  %v566 = vpop.xlane.xlu0 %565
  %567 = vadd.xlane.f32.xlu0 %v564
  %v568 = vpop.xlane.xlu0 %567
  %v569 = vcvt.f32.s32 %v566
  %v570 = vcvt.f32.s32 %v568
  %v571 = vshll.u32 %v570, 16
  %v572 = vadd.s32 %v571, %v569
  %v573 = vand.u32 %v486, 65535
  %v574 = vshrl.u32 %v486, 16
  %v575 = vcvt.s32.f32 %v573
  %v576 = vcvt.s32.f32 %v574
  %577 = vadd.xlane.f32.xlu0 %v575
  %v578 = vpop.xlane.xlu0 %577
  %579 = vadd.xlane.f32.xlu0 %v576
  %v580 = vpop.xlane.xlu0 %579
  %v581 = vcvt.f32.s32 %v578
  %v582 = vcvt.f32.s32 %v580
  %v583 = vshll.u32 %v582, 16
  %v584 = vadd.s32 %v583, %v581
  %v585 = vand.u32 %v487, 65535
  %v586 = vshrl.u32 %v487, 16
  %v587 = vcvt.s32.f32 %v585
  %v588 = vcvt.s32.f32 %v586
  %589 = vadd.xlane.f32.xlu0 %v587
  %v590 = vpop.xlane.xlu0 %589
  %591 = vadd.xlane.f32.xlu0 %v588
  %v592 = vpop.xlane.xlu0 %591
  %v593 = vcvt.f32.s32 %v590
  %v594 = vcvt.f32.s32 %v592
  %v595 = vshll.u32 %v594, 16
  %v596 = vadd.s32 %v595, %v593
  %v597 = vand.u32 %v488, 65535
  %v598 = vshrl.u32 %v488, 16
  %v599 = vcvt.s32.f32 %v597
  %v600 = vcvt.s32.f32 %v598
  %601 = vadd.xlane.f32.xlu0 %v599
  %v602 = vpop.xlane.xlu0 %601
  %603 = vadd.xlane.f32.xlu0 %v600
  %v604 = vpop.xlane.xlu0 %603
  %v605 = vcvt.f32.s32 %v602
  %v606 = vcvt.f32.s32 %v604
  %v607 = vshll.u32 %v606, 16
  %v608 = vadd.s32 %v607, %v605
  %v609 = vand.u32 %v489, 65535
  %v610 = vshrl.u32 %v489, 16
  %v611 = vcvt.s32.f32 %v609
  %v612 = vcvt.s32.f32 %v610
  %613 = vadd.xlane.f32.xlu0 %v611
  %v614 = vpop.xlane.xlu0 %613
  %615 = vadd.xlane.f32.xlu0 %v612
  %v616 = vpop.xlane.xlu0 %615
  %v617 = vcvt.f32.s32 %v614
  %v618 = vcvt.f32.s32 %v616
  %v619 = vshll.u32 %v618, 16
  %v620 = vadd.s32 %v619, %v617
  %v621 = vand.u32 %v490, 65535
  %v622 = vshrl.u32 %v490, 16
  %v623 = vcvt.s32.f32 %v621
  %v624 = vcvt.s32.f32 %v622
  %625 = vadd.xlane.f32.xlu0 %v623
  %v626 = vpop.xlane.xlu0 %625
  %627 = vadd.xlane.f32.xlu0 %v624
  %v628 = vpop.xlane.xlu0 %627
  %v629 = vcvt.f32.s32 %v626
  %v630 = vcvt.f32.s32 %v628
  %v631 = vshll.u32 %v630, 16
  %v632 = vadd.s32 %v631, %v629
  %v633 = vand.u32 %v491, 65535
  %v634 = vshrl.u32 %v491, 16
  %v635 = vcvt.s32.f32 %v633
  %v636 = vcvt.s32.f32 %v634
  %637 = vadd.xlane.f32.xlu0 %v635
  %v638 = vpop.xlane.xlu0 %637
  %639 = vadd.xlane.f32.xlu0 %v636
  %v640 = vpop.xlane.xlu0 %639
  %v641 = vcvt.f32.s32 %v638
  %v642 = vcvt.f32.s32 %v640
  %v643 = vshll.u32 %v642, 16
  %v644 = vadd.s32 %v643, %v641
  %v645 = vand.u32 %v492, 65535
  %v646 = vshrl.u32 %v492, 16
  %v647 = vcvt.s32.f32 %v645
  %v648 = vcvt.s32.f32 %v646
  %649 = vadd.xlane.f32.xlu0 %v647
  %v650 = vpop.xlane.xlu0 %649
  %651 = vadd.xlane.f32.xlu0 %v648
  %v652 = vpop.xlane.xlu0 %651
  %v653 = vcvt.f32.s32 %v650
  %v654 = vcvt.f32.s32 %v652
  %v655 = vshll.u32 %v654, 16
  %v656 = vadd.s32 %v655, %v653
  %v657 = vand.u32 %v493, 65535
  %v658 = vshrl.u32 %v493, 16
  %v659 = vcvt.s32.f32 %v657
  %v660 = vcvt.s32.f32 %v658
  %661 = vadd.xlane.f32.xlu0 %v659
  %v662 = vpop.xlane.xlu0 %661
  %663 = vadd.xlane.f32.xlu0 %v660
  %v664 = vpop.xlane.xlu0 %663
  %v665 = vcvt.f32.s32 %v662
  %v666 = vcvt.f32.s32 %v664
  %v667 = vshll.u32 %v666, 16
  %v668 = vadd.s32 %v667, %v665
  %v669 = vand.u32 %v494, 65535
  %v670 = vshrl.u32 %v494, 16
  %v671 = vcvt.s32.f32 %v669
  %v672 = vcvt.s32.f32 %v670
  %673 = vadd.xlane.f32.xlu0 %v671
  %v674 = vpop.xlane.xlu0 %673
  %675 = vadd.xlane.f32.xlu0 %v672
  %v676 = vpop.xlane.xlu0 %675
  %v677 = vcvt.f32.s32 %v674
  %v678 = vcvt.f32.s32 %v676
  %v679 = vshll.u32 %v678, 16
  %v680 = vadd.s32 %v679, %v677
  %v681 = vand.u32 %v495, 65535
  %v682 = vshrl.u32 %v495, 16
  %v683 = vcvt.s32.f32 %v681
  %v684 = vcvt.s32.f32 %v682
  %685 = vadd.xlane.f32.xlu0 %v683
  %v686 = vpop.xlane.xlu0 %685
  %687 = vadd.xlane.f32.xlu0 %v684
  %v688 = vpop.xlane.xlu0 %687
  %v689 = vcvt.f32.s32 %v686
  %v690 = vcvt.f32.s32 %v688
  %v691 = vshll.u32 %v690, 16
  %v692 = vadd.s32 %v691, %v689
  %v693 = vand.u32 %v496, 65535
  %v694 = vshrl.u32 %v496, 16
  %v695 = vcvt.s32.f32 %v693
  %v696 = vcvt.s32.f32 %v694
  %697 = vadd.xlane.f32.xlu0 %v695
  %v698 = vpop.xlane.xlu0 %697
  %699 = vadd.xlane.f32.xlu0 %v696
  %v700 = vpop.xlane.xlu0 %699
  %v701 = vcvt.f32.s32 %v698
  %v702 = vcvt.f32.s32 %v700
  %v703 = vshll.u32 %v702, 16
  %v704 = vadd.s32 %v703, %v701
  %v705 = vand.u32 %v497, 65535
  %v706 = vshrl.u32 %v497, 16
  %v707 = vcvt.s32.f32 %v705
  %v708 = vcvt.s32.f32 %v706
  %709 = vadd.xlane.f32.xlu0 %v707
  %v710 = vpop.xlane.xlu0 %709
  %711 = vadd.xlane.f32.xlu0 %v708
  %v712 = vpop.xlane.xlu0 %711
  %v713 = vcvt.f32.s32 %v710
  %v714 = vcvt.f32.s32 %v712
  %v715 = vshll.u32 %v714, 16
  %v716 = vadd.s32 %v715, %v713
  %v717 = vand.u32 %v498, 65535
  %v718 = vshrl.u32 %v498, 16
  %v719 = vcvt.s32.f32 %v717
  %v720 = vcvt.s32.f32 %v718
  %721 = vadd.xlane.f32.xlu0 %v719
  %v722 = vpop.xlane.xlu0 %721
  %723 = vadd.xlane.f32.xlu0 %v720
  %v724 = vpop.xlane.xlu0 %723
  %v725 = vcvt.f32.s32 %v722
  %v726 = vcvt.f32.s32 %v724
  %v727 = vshll.u32 %v726, 16
  %v728 = vadd.s32 %v727, %v725
  %v729 = vand.u32 %v499, 65535
  %v730 = vshrl.u32 %v499, 16
  %v731 = vcvt.s32.f32 %v729
  %v732 = vcvt.s32.f32 %v730
  %733 = vadd.xlane.f32.xlu0 %v731
  %v734 = vpop.xlane.xlu0 %733
  %735 = vadd.xlane.f32.xlu0 %v732
  %v736 = vpop.xlane.xlu0 %735
  %v737 = vcvt.f32.s32 %v734
  %v738 = vcvt.f32.s32 %v736
  %v739 = vshll.u32 %v738, 16
  %v740 = vadd.s32 %v739, %v737
  %v741 = vand.u32 %v500, 65535
  %v742 = vshrl.u32 %v500, 16
  %v743 = vcvt.s32.f32 %v741
  %v744 = vcvt.s32.f32 %v742
  %745 = vadd.xlane.f32.xlu0 %v743
  %v746 = vpop.xlane.xlu0 %745
  %747 = vadd.xlane.f32.xlu0 %v744
  %v748 = vpop.xlane.xlu0 %747
  %v749 = vcvt.f32.s32 %v746
  %v750 = vcvt.f32.s32 %v748
  %v751 = vshll.u32 %v750, 16
  %v752 = vadd.s32 %v751, %v749
  %v753 = vand.u32 %v501, 65535
  %v754 = vshrl.u32 %v501, 16
  %v755 = vcvt.s32.f32 %v753
  %v756 = vcvt.s32.f32 %v754
  %757 = vadd.xlane.f32.xlu0 %v755
  %v758 = vpop.xlane.xlu0 %757
  %759 = vadd.xlane.f32.xlu0 %v756
  %v760 = vpop.xlane.xlu0 %759
  %v761 = vcvt.f32.s32 %v758
  %v762 = vcvt.f32.s32 %v760
  %v763 = vshll.u32 %v762, 16
  %v764 = vadd.s32 %v763, %v761
  %v765 = vand.u32 %v502, 65535
  %v766 = vshrl.u32 %v502, 16
  %v767 = vcvt.s32.f32 %v765
  %v768 = vcvt.s32.f32 %v766
  %769 = vadd.xlane.f32.xlu0 %v767
  %v770 = vpop.xlane.xlu0 %769
  %771 = vadd.xlane.f32.xlu0 %v768
  %v772 = vpop.xlane.xlu0 %771
  %v773 = vcvt.f32.s32 %v770
  %v774 = vcvt.f32.s32 %v772
  %v775 = vshll.u32 %v774, 16
  %v776 = vadd.s32 %v775, %v773
  %v777 = vand.u32 %v503, 65535
  %v778 = vshrl.u32 %v503, 16
  %v779 = vcvt.s32.f32 %v777
  %v780 = vcvt.s32.f32 %v778
  %781 = vadd.xlane.f32.xlu0 %v779
  %v782 = vpop.xlane.xlu0 %781
  %783 = vadd.xlane.f32.xlu0 %v780
  %v784 = vpop.xlane.xlu0 %783
  %v785 = vcvt.f32.s32 %v782
  %v786 = vcvt.f32.s32 %v784
  %v787 = vshll.u32 %v786, 16
  %v788 = vadd.s32 %v787, %v785
  %v789 = vand.u32 %v504, 65535
  %v790 = vshrl.u32 %v504, 16
  %v791 = vcvt.s32.f32 %v789
  %v792 = vcvt.s32.f32 %v790
  %793 = vadd.xlane.f32.xlu0 %v791
  %v794 = vpop.xlane.xlu0 %793
  %795 = vadd.xlane.f32.xlu0 %v792
  %v796 = vpop.xlane.xlu0 %795
  %v797 = vcvt.f32.s32 %v794
  %v798 = vcvt.f32.s32 %v796
  %v799 = vshll.u32 %v798, 16
  %v800 = vadd.s32 %v799, %v797
  %v801 = vand.u32 %v505, 65535
  %v802 = vshrl.u32 %v505, 16
  %v803 = vcvt.s32.f32 %v801
  %v804 = vcvt.s32.f32 %v802
  %805 = vadd.xlane.f32.xlu0 %v803
  %v806 = vpop.xlane.xlu0 %805
  %807 = vadd.xlane.f32.xlu0 %v804
  %v808 = vpop.xlane.xlu0 %807
  %v809 = vcvt.f32.s32 %v806
  %v810 = vcvt.f32.s32 %v808
  %v811 = vshll.u32 %v810, 16
  %v812 = vadd.s32 %v811, %v809
  %v813 = vand.u32 %v506, 65535
  %v814 = vshrl.u32 %v506, 16
  %v815 = vcvt.s32.f32 %v813
  %v816 = vcvt.s32.f32 %v814
  %817 = vadd.xlane.f32.xlu0 %v815
  %v818 = vpop.xlane.xlu0 %817
  %819 = vadd.xlane.f32.xlu0 %v816
  %v820 = vpop.xlane.xlu0 %819
  %v821 = vcvt.f32.s32 %v818
  %v822 = vcvt.f32.s32 %v820
  %v823 = vshll.u32 %v822, 16
  %v824 = vadd.s32 %v823, %v821
  %v825 = vand.u32 %v507, 65535
  %v826 = vshrl.u32 %v507, 16
  %v827 = vcvt.s32.f32 %v825
  %v828 = vcvt.s32.f32 %v826
  %829 = vadd.xlane.f32.xlu0 %v827
  %v830 = vpop.xlane.xlu0 %829
  %831 = vadd.xlane.f32.xlu0 %v828
  %v832 = vpop.xlane.xlu0 %831
  %v833 = vcvt.f32.s32 %v830
  %v834 = vcvt.f32.s32 %v832
  %v835 = vshll.u32 %v834, 16
  %v836 = vadd.s32 %v835, %v833
  %v837 = vand.u32 %v508, 65535
  %v838 = vshrl.u32 %v508, 16
  %v839 = vcvt.s32.f32 %v837
  %v840 = vcvt.s32.f32 %v838
  %841 = vadd.xlane.f32.xlu0 %v839
  %v842 = vpop.xlane.xlu0 %841
  %843 = vadd.xlane.f32.xlu0 %v840
  %v844 = vpop.xlane.xlu0 %843
  %v845 = vcvt.f32.s32 %v842
  %v846 = vcvt.f32.s32 %v844
  %v847 = vshll.u32 %v846, 16
  %v848 = vadd.s32 %v847, %v845
  %v849 = vand.u32 %v509, 65535
  %v850 = vshrl.u32 %v509, 16
  %v851 = vcvt.s32.f32 %v849
  %v852 = vcvt.s32.f32 %v850
  %853 = vadd.xlane.f32.xlu0 %v851
  %v854 = vpop.xlane.xlu0 %853
  %855 = vadd.xlane.f32.xlu0 %v852
  %v856 = vpop.xlane.xlu0 %855
  %v857 = vcvt.f32.s32 %v854
  %v858 = vcvt.f32.s32 %v856
  %v859 = vshll.u32 %v858, 16
  %v860 = vadd.s32 %v859, %v857
  %v861 = vand.u32 %v510, 65535
  %v862 = vshrl.u32 %v510, 16
  %v863 = vcvt.s32.f32 %v861
  %v864 = vcvt.s32.f32 %v862
  %865 = vadd.xlane.f32.xlu0 %v863
  %v866 = vpop.xlane.xlu0 %865
  %867 = vadd.xlane.f32.xlu0 %v864
  %v868 = vpop.xlane.xlu0 %867
  %v869 = vcvt.f32.s32 %v866
  %v870 = vcvt.f32.s32 %v868
  %v871 = vshll.u32 %v870, 16
  %v872 = vadd.s32 %v871, %v869
  %v873 = vand.u32 %v511, 65535
  %v874 = vshrl.u32 %v511, 16
  %v875 = vcvt.s32.f32 %v873
  %v876 = vcvt.s32.f32 %v874
  %877 = vadd.xlane.f32.xlu0 %v875
  %v878 = vpop.xlane.xlu0 %877
  %879 = vadd.xlane.f32.xlu0 %v876
  %v880 = vpop.xlane.xlu0 %879
  %v881 = vcvt.f32.s32 %v878
  %v882 = vcvt.f32.s32 %v880
  %v883 = vshll.u32 %v882, 16
  %v884 = vadd.s32 %v883, %v881
  %v885 = vand.u32 %v512, 65535
  %v886 = vshrl.u32 %v512, 16
  %v887 = vcvt.s32.f32 %v885
  %v888 = vcvt.s32.f32 %v886
  %889 = vadd.xlane.f32.xlu0 %v887
  %v890 = vpop.xlane.xlu0 %889
  %891 = vadd.xlane.f32.xlu0 %v888
  %v892 = vpop.xlane.xlu0 %891
  %v893 = vcvt.f32.s32 %v890
  %v894 = vcvt.f32.s32 %v892
  %v895 = vshll.u32 %v894, 16
  %v896 = vadd.s32 %v895, %v893
  %v897 = vperm.slane %v78, 0
  %v898 = vperm.slane %v78, 1
  %vm899 = vcmp.lt.s32.totalorder %v524, %v897
  %vm900 = vcmp.lt.s32.totalorder %v536, %v897
  %vm901 = vcmp.lt.s32.totalorder %v548, %v897
  %vm902 = vcmp.lt.s32.totalorder %v560, %v897
  %vm903 = vcmp.lt.s32.totalorder %v572, %v897
  %vm904 = vcmp.lt.s32.totalorder %v584, %v897
  %vm905 = vcmp.lt.s32.totalorder %v596, %v897
  %vm906 = vcmp.lt.s32.totalorder %v608, %v897
  %vm907 = vcmp.lt.s32.totalorder %v620, %v897
  %vm908 = vcmp.lt.s32.totalorder %v632, %v897
  %vm909 = vcmp.lt.s32.totalorder %v644, %v897
  %vm910 = vcmp.lt.s32.totalorder %v656, %v897
  %vm911 = vcmp.lt.s32.totalorder %v668, %v897
  %vm912 = vcmp.lt.s32.totalorder %v680, %v897
  %vm913 = vcmp.lt.s32.totalorder %v692, %v897
  %vm914 = vcmp.lt.s32.totalorder %v704, %v897
  %vm915 = vcmp.lt.s32.totalorder %v716, %v898
  %vm916 = vcmp.lt.s32.totalorder %v728, %v898
  %vm917 = vcmp.lt.s32.totalorder %v740, %v898
  %vm918 = vcmp.lt.s32.totalorder %v752, %v898
  %vm919 = vcmp.lt.s32.totalorder %v764, %v898
  %vm920 = vcmp.lt.s32.totalorder %v776, %v898
  %vm921 = vcmp.lt.s32.totalorder %v788, %v898
  %vm922 = vcmp.lt.s32.totalorder %v800, %v898
  %vm923 = vcmp.lt.s32.totalorder %v812, %v898
  %vm924 = vcmp.lt.s32.totalorder %v824, %v898
  %vm925 = vcmp.lt.s32.totalorder %v836, %v898
  %vm926 = vcmp.lt.s32.totalorder %v848, %v898
  %vm927 = vcmp.lt.s32.totalorder %v860, %v898
  %vm928 = vcmp.lt.s32.totalorder %v872, %v898
  %vm929 = vcmp.lt.s32.totalorder %v884, %v898
  %vm930 = vcmp.lt.s32.totalorder %v896, %v898
  %v931 = vsel %vm899, 1, 0
  %v932 = vsel %vm900, 1, 0
  %v933 = vsel %vm901, 1, 0
  %v934 = vsel %vm902, 1, 0
  %v935 = vsel %vm903, 1, 0
  %v936 = vsel %vm904, 1, 0
  %v937 = vsel %vm905, 1, 0
  %v938 = vsel %vm906, 1, 0
  %v939 = vsel %vm907, 1, 0
  %v940 = vsel %vm908, 1, 0
  %v941 = vsel %vm909, 1, 0
  %v942 = vsel %vm910, 1, 0
  %v943 = vsel %vm911, 1, 0
  %v944 = vsel %vm912, 1, 0
  %v945 = vsel %vm913, 1, 0
  %v946 = vsel %vm914, 1, 0
  %v947 = vsel %vm915, 1, 0
  %v948 = vsel %vm916, 1, 0
  %v949 = vsel %vm917, 1, 0
  %v950 = vsel %vm918, 1, 0
  %v951 = vsel %vm919, 1, 0
  %v952 = vsel %vm920, 1, 0
  %v953 = vsel %vm921, 1, 0
  %v954 = vsel %vm922, 1, 0
  %v955 = vsel %vm923, 1, 0
  %v956 = vsel %vm924, 1, 0
  %v957 = vsel %vm925, 1, 0
  %v958 = vsel %vm926, 1, 0
  %v959 = vsel %vm927, 1, 0
  %v960 = vsel %vm928, 1, 0
  %v961 = vsel %vm929, 1, 0
  %v962 = vsel %vm930, 1, 0
  %963 = vset.pattern.permute.xlu0 0
  %964 = vperm.xlu0 %963, %v931
  %v965 = vpop.permute.xlu0 %964
  %966 = vset.pattern.permute.xlu0 0
  %967 = vperm.xlu0 %966, %v932
  %v968 = vpop.permute.xlu0 %967
  %969 = vset.pattern.permute.xlu0 0
  %970 = vperm.xlu0 %969, %v933
  %v971 = vpop.permute.xlu0 %970
  %972 = vset.pattern.permute.xlu0 0
  %973 = vperm.xlu0 %972, %v934
  %v974 = vpop.permute.xlu0 %973
  %975 = vset.pattern.permute.xlu0 0
  %976 = vperm.xlu0 %975, %v935
  %v977 = vpop.permute.xlu0 %976
  %978 = vset.pattern.permute.xlu0 0
  %979 = vperm.xlu0 %978, %v936
  %v980 = vpop.permute.xlu0 %979
  %981 = vset.pattern.permute.xlu0 0
  %982 = vperm.xlu0 %981, %v937
  %v983 = vpop.permute.xlu0 %982
  %984 = vset.pattern.permute.xlu0 0
  %985 = vperm.xlu0 %984, %v938
  %v986 = vpop.permute.xlu0 %985
  %987 = vset.pattern.permute.xlu0 0
  %988 = vperm.xlu0 %987, %v939
  %v989 = vpop.permute.xlu0 %988
  %990 = vset.pattern.permute.xlu0 0
  %991 = vperm.xlu0 %990, %v940
  %v992 = vpop.permute.xlu0 %991
  %993 = vset.pattern.permute.xlu0 0
  %994 = vperm.xlu0 %993, %v941
  %v995 = vpop.permute.xlu0 %994
  %996 = vset.pattern.permute.xlu0 0
  %997 = vperm.xlu0 %996, %v942
  %v998 = vpop.permute.xlu0 %997
  %999 = vset.pattern.permute.xlu0 0
  %1000 = vperm.xlu0 %999, %v943
  %v1001 = vpop.permute.xlu0 %1000
  %1002 = vset.pattern.permute.xlu0 0
  %1003 = vperm.xlu0 %1002, %v944
  %v1004 = vpop.permute.xlu0 %1003
  %1005 = vset.pattern.permute.xlu0 0
  %1006 = vperm.xlu0 %1005, %v945
  %v1007 = vpop.permute.xlu0 %1006
  %1008 = vset.pattern.permute.xlu0 0
  %1009 = vperm.xlu0 %1008, %v946
  %v1010 = vpop.permute.xlu0 %1009
  %1011 = vset.pattern.permute.xlu0 0
  %1012 = vperm.xlu0 %1011, %v947
  %v1013 = vpop.permute.xlu0 %1012
  %1014 = vset.pattern.permute.xlu0 0
  %1015 = vperm.xlu0 %1014, %v948
  %v1016 = vpop.permute.xlu0 %1015
  %1017 = vset.pattern.permute.xlu0 0
  %1018 = vperm.xlu0 %1017, %v949
  %v1019 = vpop.permute.xlu0 %1018
  %1020 = vset.pattern.permute.xlu0 0
  %1021 = vperm.xlu0 %1020, %v950
  %v1022 = vpop.permute.xlu0 %1021
  %1023 = vset.pattern.permute.xlu0 0
  %1024 = vperm.xlu0 %1023, %v951
  %v1025 = vpop.permute.xlu0 %1024
  %1026 = vset.pattern.permute.xlu0 0
  %1027 = vperm.xlu0 %1026, %v952
  %v1028 = vpop.permute.xlu0 %1027
  %1029 = vset.pattern.permute.xlu0 0
  %1030 = vperm.xlu0 %1029, %v953
  %v1031 = vpop.permute.xlu0 %1030
  %1032 = vset.pattern.permute.xlu0 0
  %1033 = vperm.xlu0 %1032, %v954
  %v1034 = vpop.permute.xlu0 %1033
  %1035 = vset.pattern.permute.xlu0 0
  %1036 = vperm.xlu0 %1035, %v955
  %v1037 = vpop.permute.xlu0 %1036
  %1038 = vset.pattern.permute.xlu0 0
  %1039 = vperm.xlu0 %1038, %v956
  %v1040 = vpop.permute.xlu0 %1039
  %1041 = vset.pattern.permute.xlu0 0
  %1042 = vperm.xlu0 %1041, %v957
  %v1043 = vpop.permute.xlu0 %1042
  %1044 = vset.pattern.permute.xlu0 0
  %1045 = vperm.xlu0 %1044, %v958
  %v1046 = vpop.permute.xlu0 %1045
  %1047 = vset.pattern.permute.xlu0 0
  %1048 = vperm.xlu0 %1047, %v959
  %v1049 = vpop.permute.xlu0 %1048
  %1050 = vset.pattern.permute.xlu0 0
  %1051 = vperm.xlu0 %1050, %v960
  %v1052 = vpop.permute.xlu0 %1051
  %1053 = vset.pattern.permute.xlu0 0
  %1054 = vperm.xlu0 %1053, %v961
  %v1055 = vpop.permute.xlu0 %1054
  %1056 = vset.pattern.permute.xlu0 0
  %1057 = vperm.xlu0 %1056, %v962
  %v1058 = vpop.permute.xlu0 %1057
  %v1059 = vperm.slane %v965, %v104
  %v1060 = vadd.s32 %v104, 4294967288
  %v1061 = vperm.slane %v968, %v1060
  %vm1062 = vcmask 130112
  %v1063 = vsel %vm1062, %v1061, %v1059
  %v1064 = vadd.s32 %v104, 4294967280
  %v1065 = vperm.slane %v971, %v1064
  %vm1066 = vcmask 195712
  %v1067 = vsel %vm1066, %v1065, %v1063
  %v1068 = vadd.s32 %v104, 4294967272
  %v1069 = vperm.slane %v974, %v1068
  %vm1070 = vcmask 261312
  %v1071 = vsel %vm1070, %v1069, %v1067
  %v1072 = vadd.s32 %v104, 4294967264
  %v1073 = vperm.slane %v977, %v1072
  %vm1074 = vcmask 326912
  %v1075 = vsel %vm1074, %v1073, %v1071
  %v1076 = vadd.s32 %v104, 4294967256
  %v1077 = vperm.slane %v980, %v1076
  %vm1078 = vcmask 392512
  %v1079 = vsel %vm1078, %v1077, %v1075
  %v1080 = vadd.s32 %v104, 4294967248
  %v1081 = vperm.slane %v983, %v1080
  %vm1082 = vcmask 458112
  %v1083 = vsel %vm1082, %v1081, %v1079
  %v1084 = vadd.s32 %v104, 4294967240
  %v1085 = vperm.slane %v986, %v1084
  %vm1086 = vcmask 523712
  %v1087 = vsel %vm1086, %v1085, %v1083
  %v1088 = vadd.s32 %v104, 4294967232
  %v1089 = vperm.slane %v989, %v1088
  %vm1090 = vcmask 589312
  %v1091 = vsel %vm1090, %v1089, %v1087
  %v1092 = vadd.s32 %v104, 4294967224
  %v1093 = vperm.slane %v992, %v1092
  %vm1094 = vcmask 654912
  %v1095 = vsel %vm1094, %v1093, %v1091
  %v1096 = vadd.s32 %v104, 4294967216
  %v1097 = vperm.slane %v995, %v1096
  %vm1098 = vcmask 720512
  %v1099 = vsel %vm1098, %v1097, %v1095
  %v1100 = vadd.s32 %v104, 4294967208
  %v1101 = vperm.slane %v998, %v1100
  %vm1102 = vcmask 786112
  %v1103 = vsel %vm1102, %v1101, %v1099
  %v1104 = vadd.s32 %v104, 4294967200
  %v1105 = vperm.slane %v1001, %v1104
  %vm1106 = vcmask 851712
  %v1107 = vsel %vm1106, %v1105, %v1103
  %v1108 = vadd.s32 %v104, 4294967192
  %v1109 = vperm.slane %v1004, %v1108
  %vm1110 = vcmask 917312
  %v1111 = vsel %vm1110, %v1109, %v1107
  %v1112 = vadd.s32 %v104, 4294967184
  %v1113 = vperm.slane %v1007, %v1112
  %vm1114 = vcmask 982912
  %v1115 = vsel %vm1114, %v1113, %v1111
  %v1116 = vadd.s32 %v104, 4294967176
  %v1117 = vperm.slane %v1010, %v1116
  %vm1118 = vcmask 1048512
  %v1119 = vsel %vm1118, %v1117, %v1115
  %v1120 = vperm.slane %v1013, %v104
  %v1121 = vperm.slane %v1016, %v1060
  %v1122 = vsel %vm1062, %v1121, %v1120
  %v1123 = vperm.slane %v1019, %v1064
  %v1124 = vsel %vm1066, %v1123, %v1122
  %v1125 = vperm.slane %v1022, %v1068
  %v1126 = vsel %vm1070, %v1125, %v1124
  %v1127 = vperm.slane %v1025, %v1072
  %v1128 = vsel %vm1074, %v1127, %v1126
  %v1129 = vperm.slane %v1028, %v1076
  %v1130 = vsel %vm1078, %v1129, %v1128
  %v1131 = vperm.slane %v1031, %v1080
  %v1132 = vsel %vm1082, %v1131, %v1130
  %v1133 = vperm.slane %v1034, %v1084
  %v1134 = vsel %vm1086, %v1133, %v1132
  %v1135 = vperm.slane %v1037, %v1088
  %v1136 = vsel %vm1090, %v1135, %v1134
  %v1137 = vperm.slane %v1040, %v1092
  %v1138 = vsel %vm1094, %v1137, %v1136
  %v1139 = vperm.slane %v1043, %v1096
  %v1140 = vsel %vm1098, %v1139, %v1138
  %v1141 = vperm.slane %v1046, %v1100
  %v1142 = vsel %vm1102, %v1141, %v1140
  %v1143 = vperm.slane %v1049, %v1104
  %v1144 = vsel %vm1106, %v1143, %v1142
  %v1145 = vperm.slane %v1052, %v1108
  %v1146 = vsel %vm1110, %v1145, %v1144
  %v1147 = vperm.slane %v1055, %v1112
  %v1148 = vsel %vm1114, %v1147, %v1146
  %v1149 = vperm.slane %v1058, %v1116
  %v1150 = vsel %vm1118, %v1149, %v1148
  %v1151 = vsel %vm82, %v1150, %v1119
  %vm1152 = vcmp.ne.s32.totalorder %v1151, 0
  %vm1153 = vmor %vm62, %vm1152
  %v1154 = vrot.slane %v23, 1
  %v1155 = vperm.slane %v23, 0
  %v1156 = vperm.slane %v1154, 0
  %vm1157 = vcmp.eq.s32.totalorder %v87, %v1155
  %vm1158 = vcmp.eq.s32.totalorder %v87, %v1156
  %v1159 = vsel %vm1157, %v17, 0.0
  %v1160 = vsel %vm1158, %v18, 0.0
  %v1161 = vrot.slane %v1159, 4
  %v1162 = vadd.f32 %v1159, %v1161
  %v1163 = vrot.slane %v1162, 2
  %v1164 = vadd.f32 %v1162, %v1163
  %v1165 = vrot.slane %v1164, 1
  %v1166 = vadd.f32 %v1164, %v1165
  %v1167 = vrot.slane %v1160, 4
  %v1168 = vadd.f32 %v1160, %v1167
  %v1169 = vrot.slane %v1168, 2
  %v1170 = vadd.f32 %v1168, %v1169
  %v1171 = vrot.slane %v1170, 1
  %v1172 = vadd.f32 %v1170, %v1171
  %v1173 = vsub.f32 %v58, %v1166
  %v1174 = vsub.f32 %v59, %v1172
  %v1177 = vsel %vm82, %v1174, %v1173
  %v1179 = vsel %vm1153, %v1177, 0.0
  %v1180 = vsel %vm64, %v1179, 0.0
  %1181 = vadd.xlane.f32.xlu0 %v1180
  %v1182 = vpop.xlane.xlu0 %1181
  %v1183 = vrot.slane %v1182, 4
  %v1184 = vadd.f32 %v1182, %v1183
  %v1185 = vrot.slane %v1184, 2
  %v1186 = vadd.f32 %v1184, %v1185
  %v1187 = vrot.slane %v1186, 1
  %v1188 = vadd.f32 %v1186, %v1187
  %s1189 = vtos %v1188
  %v1190 = vsub.f32 %v19, %v21
  %v1191 = vsub.f32 %v20, %v22
  %v1192 = vand.u32 2147483647, %v1190
  %v1193 = vand.u32 2147483647, %v1191
  %vm1194 = vcmp.lt.f32.partialorder %v1192, 1.0
  %vm1195 = vcmp.lt.f32.partialorder %v1193, 1.0
  %v1196 = vmul.f32 %v1190, 0.5
  %v1197 = vmul.f32 %v1191, 0.5
  %v1198 = vmul.f32 %v1196, %v1190
  %v1199 = vmul.f32 %v1197, %v1191
  %v1200 = vsub.f32 %v1192, 0.5
  %v1201 = vsub.f32 %v1193, 0.5
  %v1202 = vsel %vm1194, %v1198, %v1200
  %v1203 = vsel %vm1195, %v1199, %v1201
  %v1204 = vrot.slane %v63, 1
  %vm1205 = vcmp.ne.s32.totalorder %v1204, 0
  %v1206 = vsel %vm1205, 1, 0
  %v1207 = vperm.slane %v63, 0
  %v1208 = vperm.slane %v1206, 0
  %vm1209 = vcmp.eq.s32.totalorder %v1207, 1
  %vm1210 = vcmp.eq.s32.totalorder %v1208, 1
  %v1211 = vsel %vm1209, %v1202, 0.0
  %v1212 = vsel %vm1210, %v1203, 0.0
  %vm1213 = vcmask 1043456
  %v1214 = vsel %vm1213, %v1211, 0.0
  %v1215 = vsel %vm1213, %v1212, 0.0
  %v1216 = vadd.f32 %v1214, %v1215
  %1217 = vadd.xlane.f32.xlu0 %v1216
  %v1218 = vpop.xlane.xlu0 %1217
  %v1219 = vrot.slane %v1218, 4
  %v1220 = vadd.f32 %v1218, %v1219
  %v1221 = vrot.slane %v1220, 2
  %v1222 = vadd.f32 %v1220, %v1221
  %v1223 = vrot.slane %v1222, 1
  %v1224 = vadd.f32 %v1222, %v1223
  %s1225 = vtos %v1224
  %v1226 = vcvt.s32.f32 %v63
  %v1227 = vsel %vm64, %v1226, 0.0
  %1228 = vadd.xlane.f32.xlu0 %v1227
  %v1229 = vpop.xlane.xlu0 %1228
  %v1230 = vrot.slane %v1229, 4
  %v1231 = vadd.f32 %v1229, %v1230
  %v1232 = vrot.slane %v1231, 2
  %v1233 = vadd.f32 %v1231, %v1232
  %v1234 = vrot.slane %v1233, 1
  %v1235 = vadd.f32 %v1233, %v1234
  %s1236 = vtos %v1235
  %vm1237 = vcmp.eq.s32.totalorder %v104, 0
  %vm1238 = vcmp.eq.s32.totalorder %v104, 1
  %vm1239 = vcmp.eq.s32.totalorder %v104, 2
  %s1240 = sadd.f32 %s1225, %s1189
  %v1241 = vstv %s1240
  %v1242 = vsel %vm1239, %v1241, 0.0
  %v1243 = vstv %s1189
  %v1244 = vsel %vm1238, %v1243, %v1242
  %v1245 = vstv %s1225
  %v1246 = vsel %vm1237, %v1245, %v1244
  %v1247 = vstv %s1236
  %v1248 = vmax.f32 %v1247, 1.0
  %v1249 = vrcp.pop %v1248
  %vm1250 = vcmp.gt.f32.partialorder %v1247, 0.0
  %v1251 = vsel %vm1250, %v1249, 1.0
  %v1252 = vmul.f32 %v1246, %v1251
  %1253 = vst [vmem:[%s4] sm:$0x1] %v1252
  // Predicated region
  $region18: #{_forward_impl.1} parent=0 // pred_check
    _
  $region19: #{_forward_impl.1} parent=0 // pred_check_branch
    %1255 = sbr.rel (0) target = $region21
  $region20: #{_forward_impl.1} parent=0 // pred_region
    _
  $region21: #{_forward_impl.1} parent=0 // pred_fallthru
    _
  // Predicated region
  $region22: #{_forward_impl.1} parent=0 // pred_check
    _
  $region23: #{_forward_impl.1} parent=0 // pred_check_branch
    %1257 = sbr.rel (0) target = $region25
  $region24: #{_forward_impl.1} parent=0 // pred_region
    _
  $region25: #{_forward_impl.1} parent=0 // pred_fallthru
    _

</llo_original>
